<compile_context>
chip_gen: v7x
topology: tpu7x:2x2x1
jax: 0.10.0
libtpu: 0.0.40
codegen_flags: <defaults>
</compile_context>

<pallas_src>
import jax
import jax.numpy as jnp
from jax import lax
from jax.experimental import pallas as pl
from jax.experimental.pallas import tpu as pltpu


def dense_conv_kernel(alpha_ref, x_ref, scale_ref, shift_ref, w_ref, b_ref,
                      out_ref, ypad_ref):
    # x_ref:     (NB, C_in, L)        block of batch elements, NCL layout
    # scale_ref: (C_in, 1)            gamma / sqrt(var + eps)
    # shift_ref: (C_in, 1)            beta - mean * scale
    # w_ref:     (K*C_in, C_out, 1)   w_ref[k*C_in + ci] = conv_w[:, ci, k]
    # b_ref:     (C_out, 1)
    # out_ref:   (NB, C_in + C_out, L)
    # ypad_ref:  (C_in, L + 2*pad)    VMEM scratch with halo columns
    nb, c_in, L = x_ref.shape
    kc, c_out, _ = w_ref.shape
    K = kc // c_in
    pad = (K - 1) // 2

    alpha = alpha_ref[0, 0]
    scale = scale_ref[...]                                   # (C_in, 1)
    shift = shift_ref[...]                                   # (C_in, 1)
    bias = jnp.broadcast_to(b_ref[...], (c_out, L))          # hoisted once per step
    wcols = [w_ref[j] for j in range(kc)]                    # each (C_out, 1), hoisted

    # Zero the halo columns once; the [pad, pad+L) window is rewritten per row.
    ypad_ref[...] = jnp.zeros_like(ypad_ref)

    for b in range(nb):                                      # NB is small & static
        x = x_ref[b]                                         # (C_in, L)

        # BatchNorm (folded affine) + PReLU, lane-dense along L.
        y = x * scale + shift
        y = jnp.where(y >= 0, y, alpha * y)
        ypad_ref[:, pad:pad + L] = y

        # Conv1d as K*C_in broadcast-MACs on the VPU (output tile (C_out, L)).
        acc = bias
        for k in range(K):
            yk = ypad_ref[:, k:k + L]                        # shifted tap view (C_in, L)
            for ci in range(c_in):
                acc = acc + wcols[k * c_in + ci] * yk[ci:ci + 1, :]

        # Dense connection: two direct sublane-slice stores (no lane-axis concat).
        out_ref[b, :c_in, :] = x
        out_ref[b, c_in:, :] = acc


def dense_conv_layer(x_ncl, gamma, beta, alpha, conv_w, conv_b, eps=1e-5):
    """Forward of DenseConvLayer. x_ncl: (N, C_in, L) float32 (PyTorch NCL layout)."""
    N, c_in, L = x_ncl.shape
    c_out, _, K = conv_w.shape
    pad = (K - 1) // 2

    x_ncl = x_ncl.astype(jnp.float32)

    # BatchNorm1d training-mode stats (biased variance) in ONE fused pass over x:
    # var = E[x^2] - E[x]^2, folded into a per-channel affine.
    m1 = jnp.mean(x_ncl, axis=(0, 2))
    m2 = jnp.mean(x_ncl * x_ncl, axis=(0, 2))
    var = m2 - m1 * m1
    scale = gamma / jnp.sqrt(var + eps)
    shift = beta - m1 * scale

    # Weight taps laid out tap-major; each (C_out,) column becomes a (C_out, 1)
    # sublane vector:  w_taps[k*C_in + ci, :, 0] = conv_w[:, ci, k]
    w_taps = jnp.transpose(conv_w, (2, 1, 0)).reshape(K * c_in, c_out)[..., None]

    # Batch blocking: give each grid step several batch rows (per-step pipeline
    # overhead ~0.35us would dominate a single tiny row).  For very large L, tile L
    # with a halo via the index_map; not needed at these sizes.
    nb = next(d for d in (8, 4, 2, 1) if N % d == 0)
    grid = (N // nb,)

    out = pl.pallas_call(
        dense_conv_kernel,
        out_shape=jax.ShapeDtypeStruct((N, c_in + c_out, L), jnp.float32),
        grid=grid,
        in_specs=[
            pl.BlockSpec(memory_space=pltpu.SMEM),                    # alpha (1,1)
            pl.BlockSpec((nb, c_in, L), lambda n: (n, 0, 0)),         # x  (NCL)
            pl.BlockSpec((c_in, 1), lambda n: (0, 0)),                # scale
            pl.BlockSpec((c_in, 1), lambda n: (0, 0)),                # shift
            pl.BlockSpec((K * c_in, c_out, 1), lambda n: (0, 0, 0)),  # conv weight taps
            pl.BlockSpec((c_out, 1), lambda n: (0, 0)),               # conv bias
        ],
        out_specs=pl.BlockSpec((nb, c_in + c_out, L), lambda n: (n, 0, 0)),
        scratch_shapes=[pltpu.VMEM((c_in, L + 2 * pad), jnp.float32)],
        compiler_params=pltpu.CompilerParams(
            dimension_semantics=("parallel",),
            # Explicit, modest VMEM budget: safe on v5e/v6e (128 MiB) and within
            # v7x's 64 MiB physical VMEM.  Re-derive when scaling L / NB tiles.
            vmem_limit_bytes=32 * 1024 * 1024,
        ),
    )(
        jnp.reshape(alpha, (1, 1)).astype(jnp.float32),
        x_ncl,
        scale.reshape(c_in, 1).astype(jnp.float32),
        shift.reshape(c_in, 1).astype(jnp.float32),
        w_taps.astype(jnp.float32),
        conv_b.reshape(c_out, 1).astype(jnp.float32),
    )
    return out  # already NCL: (N, C_in + C_out, L)


def _reference(x_ncl, gamma, beta, alpha, conv_w, conv_b, eps=1e-5):
    """Pure-JAX reference of the PyTorch forward (training-mode BN)."""
    K = conv_w.shape[2]
    pad = (K - 1) // 2
    mean = jnp.mean(x_ncl, axis=(0, 2))
    var = jnp.mean((x_ncl - mean[None, :, None]) ** 2, axis=(0, 2))
    y = (x_ncl - mean[None, :, None]) / jnp.sqrt(var[None, :, None] + eps)
    y = y * gamma[None, :, None] + beta[None, :, None]
    y = jnp.where(y >= 0, y, alpha * y)
    out = lax.conv_general_dilated(
        y, conv_w, window_strides=(1,), padding=((pad, pad),),
        dimension_numbers=("NCH", "OIH", "NCH"))
    out = out + conv_b[None, :, None]
    return jnp.concatenate([x_ncl, out], axis=1)


if __name__ == "__main__":
    # small shapes consistent with Conv1d / BatchNorm1d: (batch, in_c, length)
    N, IN_C, OUT_C, L, K = 2, 4, 8, 16, 3

    key = jax.random.PRNGKey(0)
    k_x, k_w, k_b = jax.random.split(key, 3)

    x = jax.random.normal(k_x, (N, IN_C, L), dtype=jnp.float32)

    # deterministic parameter init (PyTorch defaults for BN / PReLU; random conv)
    gamma = jnp.ones((IN_C,), jnp.float32)          # BatchNorm1d.weight
    beta = jnp.zeros((IN_C,), jnp.float32)          # BatchNorm1d.bias
    alpha = jnp.float32(0.25)                       # PReLU.weight (num_parameters=1)
    conv_w = 0.1 * jax.random.normal(k_w, (OUT_C, IN_C, K), dtype=jnp.float32)
    conv_b = 0.1 * jax.random.normal(k_b, (OUT_C,), dtype=jnp.float32)

    out = jax.jit(dense_conv_layer)(x, gamma, beta, alpha, conv_w, conv_b)
    out = jax.block_until_ready(out)

    ref = _reference(x, gamma, beta, alpha, conv_w, conv_b)
    assert out.shape == (N, IN_C + OUT_C, L), out.shape
    assert jnp.allclose(out, ref, atol=1e-5, rtol=1e-5), float(jnp.max(jnp.abs(out - ref)))

    print("KERNEL_OK")
</pallas_src>

<mosaic_0001>
module attributes {stable_mosaic.version = 11 : i64} {
  func.func @dense_conv_kernel(%arg0: i32, %arg1: memref<1x1xf32, #tpu.memory_space<smem>>, %arg2: memref<2x4x16xf32, #tpu.memory_space<vmem>>, %arg3: memref<4x1xf32, #tpu.memory_space<vmem>>, %arg4: memref<4x1xf32, #tpu.memory_space<vmem>>, %arg5: memref<12x8x1xf32, #tpu.memory_space<vmem>>, %arg6: memref<8x1xf32, #tpu.memory_space<vmem>>, %arg7: memref<2x12x16xf32, #tpu.memory_space<vmem>>, %arg8: memref<4x18xf32, #tpu.memory_space<vmem>>) attributes {dimension_semantics = [#tpu.dimension_semantics<parallel>], iteration_bounds = array<i64: 1>, scalar_prefetch = 0 : i64, scratch_operands = 1 : i64, tpu.core_type = #tpu.core_type<tc>, window_params = [{transform_indices = @transform_0, window_bounds = array<i64: 1, 1>}, {transform_indices = @transform_1, window_bounds = array<i64: 2, 4, 16>}, {pipeline_mode = #tpu.pipeline_mode<synchronous>, transform_indices = @transform_2, window_bounds = array<i64: 4, 1>}, {pipeline_mode = #tpu.pipeline_mode<synchronous>, transform_indices = @transform_3, window_bounds = array<i64: 4, 1>}, {pipeline_mode = #tpu.pipeline_mode<synchronous>, transform_indices = @transform_4, window_bounds = array<i64: 12, 8, 1>}, {pipeline_mode = #tpu.pipeline_mode<synchronous>, transform_indices = @transform_5, window_bounds = array<i64: 8, 1>}, {transform_indices = @transform_6, window_bounds = array<i64: 2, 12, 16>}]} {
    %c0 = arith.constant 0 : index
    %c0_0 = arith.constant 0 : index
    %0 = memref.load %arg1[%c0, %c0_0] : memref<1x1xf32, #tpu.memory_space<smem>>
    %c0_1 = arith.constant 0 : index
    %c0_2 = arith.constant 0 : index
    %1 = vector.load %arg3[%c0_1, %c0_2] : memref<4x1xf32, #tpu.memory_space<vmem>>, vector<4x1xf32>
    %c0_3 = arith.constant 0 : index
    %c0_4 = arith.constant 0 : index
    %2 = vector.load %arg4[%c0_3, %c0_4] : memref<4x1xf32, #tpu.memory_space<vmem>>, vector<4x1xf32>
    %c0_5 = arith.constant 0 : index
    %c0_6 = arith.constant 0 : index
    %3 = vector.load %arg6[%c0_5, %c0_6] : memref<8x1xf32, #tpu.memory_space<vmem>>, vector<8x1xf32>
    %4 = vector.shape_cast %3 : vector<8x1xf32> to vector<8x1xf32>
    %5 = vector.broadcast %4 : vector<8x1xf32> to vector<8x16xf32>
    %c0_7 = arith.constant 0 : index
    %c0_8 = arith.constant 0 : index
    %c0_9 = arith.constant 0 : index
    %6 = vector.load %arg5[%c0_7, %c0_8, %c0_9] : memref<12x8x1xf32, #tpu.memory_space<vmem>>, vector<1x8x1xf32>
    %7 = vector.shape_cast %6 : vector<1x8x1xf32> to vector<8x1xf32>
    %c1 = arith.constant 1 : index
    %c0_10 = arith.constant 0 : index
    %c0_11 = arith.constant 0 : index
    %8 = vector.load %arg5[%c1, %c0_10, %c0_11] : memref<12x8x1xf32, #tpu.memory_space<vmem>>, vector<1x8x1xf32>
    %9 = vector.shape_cast %8 : vector<1x8x1xf32> to vector<8x1xf32>
    %c2 = arith.constant 2 : index
    %c0_12 = arith.constant 0 : index
    %c0_13 = arith.constant 0 : index
    %10 = vector.load %arg5[%c2, %c0_12, %c0_13] : memref<12x8x1xf32, #tpu.memory_space<vmem>>, vector<1x8x1xf32>
    %11 = vector.shape_cast %10 : vector<1x8x1xf32> to vector<8x1xf32>
    %c3 = arith.constant 3 : index
    %c0_14 = arith.constant 0 : index
    %c0_15 = arith.constant 0 : index
    %12 = vector.load %arg5[%c3, %c0_14, %c0_15] : memref<12x8x1xf32, #tpu.memory_space<vmem>>, vector<1x8x1xf32>
    %13 = vector.shape_cast %12 : vector<1x8x1xf32> to vector<8x1xf32>
    %c4 = arith.constant 4 : index
    %c0_16 = arith.constant 0 : index
    %c0_17 = arith.constant 0 : index
    %14 = vector.load %arg5[%c4, %c0_16, %c0_17] : memref<12x8x1xf32, #tpu.memory_space<vmem>>, vector<1x8x1xf32>
    %15 = vector.shape_cast %14 : vector<1x8x1xf32> to vector<8x1xf32>
    %c5 = arith.constant 5 : index
    %c0_18 = arith.constant 0 : index
    %c0_19 = arith.constant 0 : index
    %16 = vector.load %arg5[%c5, %c0_18, %c0_19] : memref<12x8x1xf32, #tpu.memory_space<vmem>>, vector<1x8x1xf32>
    %17 = vector.shape_cast %16 : vector<1x8x1xf32> to vector<8x1xf32>
    %c6 = arith.constant 6 : index
    %c0_20 = arith.constant 0 : index
    %c0_21 = arith.constant 0 : index
    %18 = vector.load %arg5[%c6, %c0_20, %c0_21] : memref<12x8x1xf32, #tpu.memory_space<vmem>>, vector<1x8x1xf32>
    %19 = vector.shape_cast %18 : vector<1x8x1xf32> to vector<8x1xf32>
    %c7 = arith.constant 7 : index
    %c0_22 = arith.constant 0 : index
    %c0_23 = arith.constant 0 : index
    %20 = vector.load %arg5[%c7, %c0_22, %c0_23] : memref<12x8x1xf32, #tpu.memory_space<vmem>>, vector<1x8x1xf32>
    %21 = vector.shape_cast %20 : vector<1x8x1xf32> to vector<8x1xf32>
    %c8 = arith.constant 8 : index
    %c0_24 = arith.constant 0 : index
    %c0_25 = arith.constant 0 : index
    %22 = vector.load %arg5[%c8, %c0_24, %c0_25] : memref<12x8x1xf32, #tpu.memory_space<vmem>>, vector<1x8x1xf32>
    %23 = vector.shape_cast %22 : vector<1x8x1xf32> to vector<8x1xf32>
    %c9 = arith.constant 9 : index
    %c0_26 = arith.constant 0 : index
    %c0_27 = arith.constant 0 : index
    %24 = vector.load %arg5[%c9, %c0_26, %c0_27] : memref<12x8x1xf32, #tpu.memory_space<vmem>>, vector<1x8x1xf32>
    %25 = vector.shape_cast %24 : vector<1x8x1xf32> to vector<8x1xf32>
    %c10 = arith.constant 10 : index
    %c0_28 = arith.constant 0 : index
    %c0_29 = arith.constant 0 : index
    %26 = vector.load %arg5[%c10, %c0_28, %c0_29] : memref<12x8x1xf32, #tpu.memory_space<vmem>>, vector<1x8x1xf32>
    %27 = vector.shape_cast %26 : vector<1x8x1xf32> to vector<8x1xf32>
    %c11 = arith.constant 11 : index
    %c0_30 = arith.constant 0 : index
    %c0_31 = arith.constant 0 : index
    %28 = vector.load %arg5[%c11, %c0_30, %c0_31] : memref<12x8x1xf32, #tpu.memory_space<vmem>>, vector<1x8x1xf32>
    %29 = vector.shape_cast %28 : vector<1x8x1xf32> to vector<8x1xf32>
    %cst = arith.constant 0.000000e+00 : f32
    %30 = vector.broadcast %cst : f32 to vector<4x18xf32>
    %c0_32 = arith.constant 0 : index
    %c0_33 = arith.constant 0 : index
    %31 = vector.load %arg8[%c0_32, %c0_33] : memref<4x18xf32, #tpu.memory_space<vmem>>, vector<4x18xf32>
    tpu.vector_store %arg8[%c0_32, %c0_33], %30 {strides = array<i32>} : memref<4x18xf32, #tpu.memory_space<vmem>>, vector<4x18xf32>,
    %c0_34 = arith.constant 0 : index
    %c0_35 = arith.constant 0 : index
    %c0_36 = arith.constant 0 : index
    %32 = vector.load %arg2[%c0_34, %c0_35, %c0_36] : memref<2x4x16xf32, #tpu.memory_space<vmem>>, vector<1x4x16xf32>
    %33 = vector.shape_cast %32 : vector<1x4x16xf32> to vector<4x16xf32>
    %34 = vector.broadcast %1 : vector<4x1xf32> to vector<4x16xf32>
    %35 = arith.mulf %33, %34 : vector<4x16xf32>
    %36 = vector.broadcast %2 : vector<4x1xf32> to vector<4x16xf32>
    %37 = arith.addf %35, %36 : vector<4x16xf32>
    %cst_37 = arith.constant 0.000000e+00 : f32
    %38 = vector.broadcast %cst_37 : f32 to vector<4x16xf32>
    %39 = arith.cmpf oge, %37, %38 : vector<4x16xf32>
    %40 = vector.broadcast %0 : f32 to vector<4x16xf32>
    %41 = arith.mulf %40, %37 : vector<4x16xf32>
    %42 = arith.select %39, %37, %41 : vector<4x16xi1>, vector<4x16xf32>
    %c0_38 = arith.constant 0 : index
    %c1_39 = arith.constant 1 : index
    %43 = vector.load %arg8[%c0_38, %c1_39] : memref<4x18xf32, #tpu.memory_space<vmem>>, vector<4x16xf32>
    tpu.vector_store %arg8[%c0_38, %c1_39], %42 {strides = array<i32>} : memref<4x18xf32, #tpu.memory_space<vmem>>, vector<4x16xf32>,
    %c0_40 = arith.constant 0 : index
    %c0_41 = arith.constant 0 : index
    %44 = vector.load %arg8[%c0_40, %c0_41] : memref<4x18xf32, #tpu.memory_space<vmem>>, vector<4x16xf32>
    %45 = vector.extract_strided_slice %44 {offsets = [0, 0], sizes = [1, 16], strides = [1, 1]} : vector<4x16xf32> to vector<1x16xf32>
    %46 = vector.broadcast %7 : vector<8x1xf32> to vector<8x16xf32>
    %47 = vector.broadcast %45 : vector<1x16xf32> to vector<8x16xf32>
    %48 = arith.mulf %46, %47 : vector<8x16xf32>
    %49 = arith.addf %5, %48 : vector<8x16xf32>
    %50 = vector.extract_strided_slice %44 {offsets = [1, 0], sizes = [1, 16], strides = [1, 1]} : vector<4x16xf32> to vector<1x16xf32>
    %51 = vector.broadcast %9 : vector<8x1xf32> to vector<8x16xf32>
    %52 = vector.broadcast %50 : vector<1x16xf32> to vector<8x16xf32>
    %53 = arith.mulf %51, %52 : vector<8x16xf32>
    %54 = arith.addf %49, %53 : vector<8x16xf32>
    %55 = vector.extract_strided_slice %44 {offsets = [2, 0], sizes = [1, 16], strides = [1, 1]} : vector<4x16xf32> to vector<1x16xf32>
    %56 = vector.broadcast %11 : vector<8x1xf32> to vector<8x16xf32>
    %57 = vector.broadcast %55 : vector<1x16xf32> to vector<8x16xf32>
    %58 = arith.mulf %56, %57 : vector<8x16xf32>
    %59 = arith.addf %54, %58 : vector<8x16xf32>
    %60 = vector.extract_strided_slice %44 {offsets = [3, 0], sizes = [1, 16], strides = [1, 1]} : vector<4x16xf32> to vector<1x16xf32>
    %61 = vector.broadcast %13 : vector<8x1xf32> to vector<8x16xf32>
    %62 = vector.broadcast %60 : vector<1x16xf32> to vector<8x16xf32>
    %63 = arith.mulf %61, %62 : vector<8x16xf32>
    %64 = arith.addf %59, %63 : vector<8x16xf32>
    %c0_42 = arith.constant 0 : index
    %c1_43 = arith.constant 1 : index
    %65 = vector.load %arg8[%c0_42, %c1_43] : memref<4x18xf32, #tpu.memory_space<vmem>>, vector<4x16xf32>
    %66 = vector.extract_strided_slice %65 {offsets = [0, 0], sizes = [1, 16], strides = [1, 1]} : vector<4x16xf32> to vector<1x16xf32>
    %67 = vector.broadcast %15 : vector<8x1xf32> to vector<8x16xf32>
    %68 = vector.broadcast %66 : vector<1x16xf32> to vector<8x16xf32>
    %69 = arith.mulf %67, %68 : vector<8x16xf32>
    %70 = arith.addf %64, %69 : vector<8x16xf32>
    %71 = vector.extract_strided_slice %65 {offsets = [1, 0], sizes = [1, 16], strides = [1, 1]} : vector<4x16xf32> to vector<1x16xf32>
    %72 = vector.broadcast %17 : vector<8x1xf32> to vector<8x16xf32>
    %73 = vector.broadcast %71 : vector<1x16xf32> to vector<8x16xf32>
    %74 = arith.mulf %72, %73 : vector<8x16xf32>
    %75 = arith.addf %70, %74 : vector<8x16xf32>
    %76 = vector.extract_strided_slice %65 {offsets = [2, 0], sizes = [1, 16], strides = [1, 1]} : vector<4x16xf32> to vector<1x16xf32>
    %77 = vector.broadcast %19 : vector<8x1xf32> to vector<8x16xf32>
    %78 = vector.broadcast %76 : vector<1x16xf32> to vector<8x16xf32>
    %79 = arith.mulf %77, %78 : vector<8x16xf32>
    %80 = arith.addf %75, %79 : vector<8x16xf32>
    %81 = vector.extract_strided_slice %65 {offsets = [3, 0], sizes = [1, 16], strides = [1, 1]} : vector<4x16xf32> to vector<1x16xf32>
    %82 = vector.broadcast %21 : vector<8x1xf32> to vector<8x16xf32>
    %83 = vector.broadcast %81 : vector<1x16xf32> to vector<8x16xf32>
    %84 = arith.mulf %82, %83 : vector<8x16xf32>
    %85 = arith.addf %80, %84 : vector<8x16xf32>
    %c0_44 = arith.constant 0 : index
    %c2_45 = arith.constant 2 : index
    %86 = vector.load %arg8[%c0_44, %c2_45] : memref<4x18xf32, #tpu.memory_space<vmem>>, vector<4x16xf32>
    %87 = vector.extract_strided_slice %86 {offsets = [0, 0], sizes = [1, 16], strides = [1, 1]} : vector<4x16xf32> to vector<1x16xf32>
    %88 = vector.broadcast %23 : vector<8x1xf32> to vector<8x16xf32>
    %89 = vector.broadcast %87 : vector<1x16xf32> to vector<8x16xf32>
    %90 = arith.mulf %88, %89 : vector<8x16xf32>
    %91 = arith.addf %85, %90 : vector<8x16xf32>
    %92 = vector.extract_strided_slice %86 {offsets = [1, 0], sizes = [1, 16], strides = [1, 1]} : vector<4x16xf32> to vector<1x16xf32>
    %93 = vector.broadcast %25 : vector<8x1xf32> to vector<8x16xf32>
    %94 = vector.broadcast %92 : vector<1x16xf32> to vector<8x16xf32>
    %95 = arith.mulf %93, %94 : vector<8x16xf32>
    %96 = arith.addf %91, %95 : vector<8x16xf32>
    %97 = vector.extract_strided_slice %86 {offsets = [2, 0], sizes = [1, 16], strides = [1, 1]} : vector<4x16xf32> to vector<1x16xf32>
    %98 = vector.broadcast %27 : vector<8x1xf32> to vector<8x16xf32>
    %99 = vector.broadcast %97 : vector<1x16xf32> to vector<8x16xf32>
    %100 = arith.mulf %98, %99 : vector<8x16xf32>
    %101 = arith.addf %96, %100 : vector<8x16xf32>
    %102 = vector.extract_strided_slice %86 {offsets = [3, 0], sizes = [1, 16], strides = [1, 1]} : vector<4x16xf32> to vector<1x16xf32>
    %103 = vector.broadcast %29 : vector<8x1xf32> to vector<8x16xf32>
    %104 = vector.broadcast %102 : vector<1x16xf32> to vector<8x16xf32>
    %105 = arith.mulf %103, %104 : vector<8x16xf32>
    %106 = arith.addf %101, %105 : vector<8x16xf32>
    %c0_46 = arith.constant 0 : index
    %c0_47 = arith.constant 0 : index
    %c0_48 = arith.constant 0 : index
    %107 = vector.load %arg7[%c0_46, %c0_47, %c0_48] : memref<2x12x16xf32, #tpu.memory_space<vmem>>, vector<1x4x16xf32>
    %108 = vector.shape_cast %107 : vector<1x4x16xf32> to vector<4x16xf32>
    %109 = vector.shape_cast %33 : vector<4x16xf32> to vector<1x4x16xf32>
    tpu.vector_store %arg7[%c0_46, %c0_47, %c0_48], %109 {strides = array<i32>} : memref<2x12x16xf32, #tpu.memory_space<vmem>>, vector<1x4x16xf32>,
    %c0_49 = arith.constant 0 : index
    %c4_50 = arith.constant 4 : index
    %c0_51 = arith.constant 0 : index
    %110 = vector.load %arg7[%c0_49, %c4_50, %c0_51] : memref<2x12x16xf32, #tpu.memory_space<vmem>>, vector<1x8x16xf32>
    %111 = vector.shape_cast %110 : vector<1x8x16xf32> to vector<8x16xf32>
    %112 = vector.shape_cast %106 : vector<8x16xf32> to vector<1x8x16xf32>
    tpu.vector_store %arg7[%c0_49, %c4_50, %c0_51], %112 {strides = array<i32>} : memref<2x12x16xf32, #tpu.memory_space<vmem>>, vector<1x8x16xf32>,
    %c1_52 = arith.constant 1 : index
    %c0_53 = arith.constant 0 : index
    %c0_54 = arith.constant 0 : index
    %113 = vector.load %arg2[%c1_52, %c0_53, %c0_54] : memref<2x4x16xf32, #tpu.memory_space<vmem>>, vector<1x4x16xf32>
    %114 = vector.shape_cast %113 : vector<1x4x16xf32> to vector<4x16xf32>
    %115 = vector.broadcast %1 : vector<4x1xf32> to vector<4x16xf32>
    %116 = arith.mulf %114, %115 : vector<4x16xf32>
    %117 = vector.broadcast %2 : vector<4x1xf32> to vector<4x16xf32>
    %118 = arith.addf %116, %117 : vector<4x16xf32>
    %cst_55 = arith.constant 0.000000e+00 : f32
    %119 = vector.broadcast %cst_55 : f32 to vector<4x16xf32>
    %120 = arith.cmpf oge, %118, %119 : vector<4x16xf32>
    %121 = vector.broadcast %0 : f32 to vector<4x16xf32>
    %122 = arith.mulf %121, %118 : vector<4x16xf32>
    %123 = arith.select %120, %118, %122 : vector<4x16xi1>, vector<4x16xf32>
    %c0_56 = arith.constant 0 : index
    %c1_57 = arith.constant 1 : index
    %124 = vector.load %arg8[%c0_56, %c1_57] : memref<4x18xf32, #tpu.memory_space<vmem>>, vector<4x16xf32>
    tpu.vector_store %arg8[%c0_56, %c1_57], %123 {strides = array<i32>} : memref<4x18xf32, #tpu.memory_space<vmem>>, vector<4x16xf32>,
    %c0_58 = arith.constant 0 : index
    %c0_59 = arith.constant 0 : index
    %125 = vector.load %arg8[%c0_58, %c0_59] : memref<4x18xf32, #tpu.memory_space<vmem>>, vector<4x16xf32>
    %126 = vector.extract_strided_slice %125 {offsets = [0, 0], sizes = [1, 16], strides = [1, 1]} : vector<4x16xf32> to vector<1x16xf32>
    %127 = vector.broadcast %7 : vector<8x1xf32> to vector<8x16xf32>
    %128 = vector.broadcast %126 : vector<1x16xf32> to vector<8x16xf32>
    %129 = arith.mulf %127, %128 : vector<8x16xf32>
    %130 = arith.addf %5, %129 : vector<8x16xf32>
    %131 = vector.extract_strided_slice %125 {offsets = [1, 0], sizes = [1, 16], strides = [1, 1]} : vector<4x16xf32> to vector<1x16xf32>
    %132 = vector.broadcast %9 : vector<8x1xf32> to vector<8x16xf32>
    %133 = vector.broadcast %131 : vector<1x16xf32> to vector<8x16xf32>
    %134 = arith.mulf %132, %133 : vector<8x16xf32>
    %135 = arith.addf %130, %134 : vector<8x16xf32>
    %136 = vector.extract_strided_slice %125 {offsets = [2, 0], sizes = [1, 16], strides = [1, 1]} : vector<4x16xf32> to vector<1x16xf32>
    %137 = vector.broadcast %11 : vector<8x1xf32> to vector<8x16xf32>
    %138 = vector.broadcast %136 : vector<1x16xf32> to vector<8x16xf32>
    %139 = arith.mulf %137, %138 : vector<8x16xf32>
    %140 = arith.addf %135, %139 : vector<8x16xf32>
    %141 = vector.extract_strided_slice %125 {offsets = [3, 0], sizes = [1, 16], strides = [1, 1]} : vector<4x16xf32> to vector<1x16xf32>
    %142 = vector.broadcast %13 : vector<8x1xf32> to vector<8x16xf32>
    %143 = vector.broadcast %141 : vector<1x16xf32> to vector<8x16xf32>
    %144 = arith.mulf %142, %143 : vector<8x16xf32>
    %145 = arith.addf %140, %144 : vector<8x16xf32>
    %c0_60 = arith.constant 0 : index
    %c1_61 = arith.constant 1 : index
    %146 = vector.load %arg8[%c0_60, %c1_61] : memref<4x18xf32, #tpu.memory_space<vmem>>, vector<4x16xf32>
    %147 = vector.extract_strided_slice %146 {offsets = [0, 0], sizes = [1, 16], strides = [1, 1]} : vector<4x16xf32> to vector<1x16xf32>
    %148 = vector.broadcast %15 : vector<8x1xf32> to vector<8x16xf32>
    %149 = vector.broadcast %147 : vector<1x16xf32> to vector<8x16xf32>
    %150 = arith.mulf %148, %149 : vector<8x16xf32>
    %151 = arith.addf %145, %150 : vector<8x16xf32>
    %152 = vector.extract_strided_slice %146 {offsets = [1, 0], sizes = [1, 16], strides = [1, 1]} : vector<4x16xf32> to vector<1x16xf32>
    %153 = vector.broadcast %17 : vector<8x1xf32> to vector<8x16xf32>
    %154 = vector.broadcast %152 : vector<1x16xf32> to vector<8x16xf32>
    %155 = arith.mulf %153, %154 : vector<8x16xf32>
    %156 = arith.addf %151, %155 : vector<8x16xf32>
    %157 = vector.extract_strided_slice %146 {offsets = [2, 0], sizes = [1, 16], strides = [1, 1]} : vector<4x16xf32> to vector<1x16xf32>
    %158 = vector.broadcast %19 : vector<8x1xf32> to vector<8x16xf32>
    %159 = vector.broadcast %157 : vector<1x16xf32> to vector<8x16xf32>
    %160 = arith.mulf %158, %159 : vector<8x16xf32>
    %161 = arith.addf %156, %160 : vector<8x16xf32>
    %162 = vector.extract_strided_slice %146 {offsets = [3, 0], sizes = [1, 16], strides = [1, 1]} : vector<4x16xf32> to vector<1x16xf32>
    %163 = vector.broadcast %21 : vector<8x1xf32> to vector<8x16xf32>
    %164 = vector.broadcast %162 : vector<1x16xf32> to vector<8x16xf32>
    %165 = arith.mulf %163, %164 : vector<8x16xf32>
    %166 = arith.addf %161, %165 : vector<8x16xf32>
    %c0_62 = arith.constant 0 : index
    %c2_63 = arith.constant 2 : index
    %167 = vector.load %arg8[%c0_62, %c2_63] : memref<4x18xf32, #tpu.memory_space<vmem>>, vector<4x16xf32>
    %168 = vector.extract_strided_slice %167 {offsets = [0, 0], sizes = [1, 16], strides = [1, 1]} : vector<4x16xf32> to vector<1x16xf32>
    %169 = vector.broadcast %23 : vector<8x1xf32> to vector<8x16xf32>
    %170 = vector.broadcast %168 : vector<1x16xf32> to vector<8x16xf32>
    %171 = arith.mulf %169, %170 : vector<8x16xf32>
    %172 = arith.addf %166, %171 : vector<8x16xf32>
    %173 = vector.extract_strided_slice %167 {offsets = [1, 0], sizes = [1, 16], strides = [1, 1]} : vector<4x16xf32> to vector<1x16xf32>
    %174 = vector.broadcast %25 : vector<8x1xf32> to vector<8x16xf32>
    %175 = vector.broadcast %173 : vector<1x16xf32> to vector<8x16xf32>
    %176 = arith.mulf %174, %175 : vector<8x16xf32>
    %177 = arith.addf %172, %176 : vector<8x16xf32>
    %178 = vector.extract_strided_slice %167 {offsets = [2, 0], sizes = [1, 16], strides = [1, 1]} : vector<4x16xf32> to vector<1x16xf32>
    %179 = vector.broadcast %27 : vector<8x1xf32> to vector<8x16xf32>
    %180 = vector.broadcast %178 : vector<1x16xf32> to vector<8x16xf32>
    %181 = arith.mulf %179, %180 : vector<8x16xf32>
    %182 = arith.addf %177, %181 : vector<8x16xf32>
    %183 = vector.extract_strided_slice %167 {offsets = [3, 0], sizes = [1, 16], strides = [1, 1]} : vector<4x16xf32> to vector<1x16xf32>
    %184 = vector.broadcast %29 : vector<8x1xf32> to vector<8x16xf32>
    %185 = vector.broadcast %183 : vector<1x16xf32> to vector<8x16xf32>
    %186 = arith.mulf %184, %185 : vector<8x16xf32>
    %187 = arith.addf %182, %186 : vector<8x16xf32>
    %c1_64 = arith.constant 1 : index
    %c0_65 = arith.constant 0 : index
    %c0_66 = arith.constant 0 : index
    %188 = vector.load %arg7[%c1_64, %c0_65, %c0_66] : memref<2x12x16xf32, #tpu.memory_space<vmem>>, vector<1x4x16xf32>
    %189 = vector.shape_cast %188 : vector<1x4x16xf32> to vector<4x16xf32>
    %190 = vector.shape_cast %114 : vector<4x16xf32> to vector<1x4x16xf32>
    tpu.vector_store %arg7[%c1_64, %c0_65, %c0_66], %190 {strides = array<i32>} : memref<2x12x16xf32, #tpu.memory_space<vmem>>, vector<1x4x16xf32>,
    %c1_67 = arith.constant 1 : index
    %c4_68 = arith.constant 4 : index
    %c0_69 = arith.constant 0 : index
    %191 = vector.load %arg7[%c1_67, %c4_68, %c0_69] : memref<2x12x16xf32, #tpu.memory_space<vmem>>, vector<1x8x16xf32>
    %192 = vector.shape_cast %191 : vector<1x8x16xf32> to vector<8x16xf32>
    %193 = vector.shape_cast %187 : vector<8x16xf32> to vector<1x8x16xf32>
    tpu.vector_store %arg7[%c1_67, %c4_68, %c0_69], %193 {strides = array<i32>} : memref<2x12x16xf32, #tpu.memory_space<vmem>>, vector<1x8x16xf32>,
    return
  }
  func.func @transform_0(%arg0: i32) -> (i32, i32) {
    %c0_i32 = arith.constant 0 : i32
    %c0_i32_0 = arith.constant 0 : i32
    %c0_i32_1 = arith.constant 0 : i32
    return %c0_i32, %c0_i32_0 : i32, i32
  }
  func.func @transform_1(%arg0: i32) -> (i32, i32, i32) {
    %c0_i32 = arith.constant 0 : i32
    %c0_i32_0 = arith.constant 0 : i32
    %c0_i32_1 = arith.constant 0 : i32
    return %arg0, %c0_i32, %c0_i32_0 : i32, i32, i32
  }
  func.func @transform_2(%arg0: i32) -> (i32, i32) {
    %c0_i32 = arith.constant 0 : i32
    %c0_i32_0 = arith.constant 0 : i32
    %c0_i32_1 = arith.constant 0 : i32
    return %c0_i32, %c0_i32_0 : i32, i32
  }
  func.func @transform_3(%arg0: i32) -> (i32, i32) {
    %c0_i32 = arith.constant 0 : i32
    %c0_i32_0 = arith.constant 0 : i32
    %c0_i32_1 = arith.constant 0 : i32
    return %c0_i32, %c0_i32_0 : i32, i32
  }
  func.func @transform_4(%arg0: i32) -> (i32, i32, i32) {
    %c0_i32 = arith.constant 0 : i32
    %c0_i32_0 = arith.constant 0 : i32
    %c0_i32_1 = arith.constant 0 : i32
    %c0_i32_2 = arith.constant 0 : i32
    return %c0_i32, %c0_i32_0, %c0_i32_1 : i32, i32, i32
  }
  func.func @transform_5(%arg0: i32) -> (i32, i32) {
    %c0_i32 = arith.constant 0 : i32
    %c0_i32_0 = arith.constant 0 : i32
    %c0_i32_1 = arith.constant 0 : i32
    return %c0_i32, %c0_i32_0 : i32, i32
  }
  func.func @transform_6(%arg0: i32) -> (i32, i32, i32) {
    %c0_i32 = arith.constant 0 : i32
    %c0_i32_0 = arith.constant 0 : i32
    %c0_i32_1 = arith.constant 0 : i32
    return %arg0, %c0_i32, %c0_i32_0 : i32, i32, i32
  }
}

</mosaic_0001>

<llo_original>
// kernel: dense_conv_layer.1
$region0: #{dense_conv_layer.1}
  #allocation0 [shape = 'u32[]', space=smem, size = 0x4, offset = 0x4, fixed_abs, tag = 'smem constant byte address 0x4 - core index']
  #allocation1 [shape = 'u32[144,128]{1,0:T(1,128)}', space=vmem, size = 0x12000, scoped, tag = 'internal scratch']
  #allocation2 [shape = 'f32[4,18]{1,0:T(4,128)}', space=vmem, size = 0x800, scoped, tag = 'scratch operand']
  #allocation3 [shape = 'f32[1,1]{1,0:T(1,128)S(6)}', space=smem, size = 0x200, scoped, tag = 'scoped memory for dense_conv_layer.1']
  %s0 = inlined_call_operand.<no memory space> [shape: f32[1,1], index: 0, kind: input, shape index: {}]
  %s1 = inlined_call_operand.vmem [shape: f32[2,4,16], index: 1, kind: input, shape index: {}]
  %s2 = inlined_call_operand.vmem [shape: f32[4,1], index: 2, kind: input, shape index: {}]
  %s3 = inlined_call_operand.vmem [shape: f32[4,1], index: 3, kind: input, shape index: {}]
  %s4 = inlined_call_operand.vmem [shape: f32[12,8,1], index: 4, kind: input, shape index: {}]
  %s5 = inlined_call_operand.vmem [shape: f32[8,1], index: 5, kind: input, shape index: {}]
  %s6 = inlined_call_operand.vmem [shape: f32[2,12,16], index: 6, kind: output, shape index: {}]
  %s7 = sld [smem:[#allocation0]]
  $region34: #{dense_conv_layer.1} parent=0
    _
  %s9 = ssub.s32 1, %s7
  %s10 = scalar_select 0, %s9, %s7
  %11 = sst [smem:[#allocation3]] %s0
  // Predicated region
  $region2: #{dense_conv_layer.1} parent=0 // pred_check
    _
  $region3: #{dense_conv_layer.1} parent=0 // pred_check_branch
    %13 = sbr.rel (0) target = $region5
  $region4: #{dense_conv_layer.1} parent=0 // pred_region
    _
  $region5: #{dense_conv_layer.1} parent=0 // pred_fallthru
    _
  // Predicated region
  $region6: #{dense_conv_layer.1} parent=0 // pred_check
    _
  $region7: #{dense_conv_layer.1} parent=0 // pred_check_branch
    %15 = sbr.rel (0) target = $region9
  $region8: #{dense_conv_layer.1} parent=0 // pred_region
    _
  $region9: #{dense_conv_layer.1} parent=0 // pred_fallthru
    _
  // Predicated region
  $region10: #{dense_conv_layer.1} parent=0 // pred_check
    _
  $region11: #{dense_conv_layer.1} parent=0 // pred_check_branch
    %17 = sbr.rel (0) target = $region13
  $region12: #{dense_conv_layer.1} parent=0 // pred_region
    _
  $region13: #{dense_conv_layer.1} parent=0 // pred_fallthru
    _
  // Predicated region
  $region14: #{dense_conv_layer.1} parent=0 // pred_check
    _
  $region15: #{dense_conv_layer.1} parent=0 // pred_check_branch
    %19 = sbr.rel (0) target = $region17
  $region16: #{dense_conv_layer.1} parent=0 // pred_region
    _
  $region17: #{dense_conv_layer.1} parent=0 // pred_fallthru
    _
  // Predicated region
  $region18: #{dense_conv_layer.1} parent=0 // pred_check
    _
  $region19: #{dense_conv_layer.1} parent=0 // pred_check_branch
    %21 = sbr.rel (0) target = $region21
  $region20: #{dense_conv_layer.1} parent=0 // pred_region
    _
  $region21: #{dense_conv_layer.1} parent=0 // pred_fallthru
    _
  // Predicated region
  $region22: #{dense_conv_layer.1} parent=0 // pred_check
    _
  $region23: #{dense_conv_layer.1} parent=0 // pred_check_branch
    %23 = sbr.rel (0) target = $region25
  $region24: #{dense_conv_layer.1} parent=0 // pred_region
    _
  $region25: #{dense_conv_layer.1} parent=0 // pred_fallthru
    _
  %s24 = sld [smem:[#allocation3]]
  %v25 = vld [vmem:[%s2] sm:$0xf]
  %v26 = vld [vmem:[%s3] sm:$0xf]
  %v27 = vld [vmem:[%s5] sm:$0xff]
  %29 = vset.pattern.permute.xlu0 0
  %30 = vperm.xlu0 %29, %v27
  %v31 = vpop.permute.xlu0 %30
  %v33 = vld [vmem:[%s4] sm:$0xff]
  %s34 = scalar_lea.vmem %s4, 8
  %v35 = vld [vmem:[%s34] sm:$0xff]
  %s36 = scalar_lea.vmem %s4, 16
  %v37 = vld [vmem:[%s36] sm:$0xff]
  %s38 = scalar_lea.vmem %s4, 24
  %v39 = vld [vmem:[%s38] sm:$0xff]
  %s40 = scalar_lea.vmem %s4, 32
  %v41 = vld [vmem:[%s40] sm:$0xff]
  %s42 = scalar_lea.vmem %s4, 40
  %v43 = vld [vmem:[%s42] sm:$0xff]
  %s44 = scalar_lea.vmem %s4, 48
  %v45 = vld [vmem:[%s44] sm:$0xff]
  %s46 = scalar_lea.vmem %s4, 56
  %v47 = vld [vmem:[%s46] sm:$0xff]
  %s48 = scalar_lea.vmem %s4, 64
  %v49 = vld [vmem:[%s48] sm:$0xff]
  %s50 = scalar_lea.vmem %s4, 72
  %v51 = vld [vmem:[%s50] sm:$0xff]
  %s52 = scalar_lea.vmem %s4, 80
  %v53 = vld [vmem:[%s52] sm:$0xff]
  %s54 = scalar_lea.vmem %s4, 88
  %v55 = vld [vmem:[%s54] sm:$0xff]
  %vm56 = vcmask 142336
  %57 = vst.msk [vmem:[#allocation2] sm:$0xf] %vm56, 0.0
  %v58 = vld [vmem:[%s1] sm:$0xf]
  %60 = vset.pattern.permute.xlu0 0
  %61 = vperm.xlu0 %60, %v25
  %v62 = vpop.permute.xlu0 %61
  %v64 = vmul.f32 %v58, %v62
  %66 = vset.pattern.permute.xlu0 0
  %67 = vperm.xlu0 %66, %v26
  %v68 = vpop.permute.xlu0 %67
  %v70 = vadd.f32 %v64, %v68
  %vm71 = vcmp.ge.f32.partialorder %v70, 0.0
  %v72 = vstv %s24
  %v73 = vmul.f32 %v72, %v70
  %v74 = vsel %vm71, %v70, %v73
  %76 = vrot.lane.b32.xlu0 %v74, 1
  %v77 = vpop.permute.xlu0 %76
  %vm79 = vcmask 134152
  %80 = vst.msk [vmem:[#allocation2] sm:$0xf] %vm79, %v77
  %v81 = vld [vmem:[#allocation2] sm:$0xf]
  %83 = vset.pattern.permute.xlu0 0
  %84 = vperm.xlu0 %83, %v33
  %v85 = vpop.permute.xlu0 %84
  %v87 = vlaneseq
  %v88 = vshrl.u32 %v87, 7
  %v89 = vsub.s32 0, %v88
  %v90 = vrot.slane %v81, %v89
  %v91 = vmul.f32 %v85, %v90
  %v92 = vadd.f32 %v31, %v91
  %94 = vset.pattern.permute.xlu0 0
  %95 = vperm.xlu0 %94, %v35
  %v96 = vpop.permute.xlu0 %95
  %v98 = vlaneseq
  %v99 = vshrl.u32 %v98, 7
  %v100 = vsub.s32 1, %v99
  %v101 = vrot.slane %v81, %v100
  %v102 = vmul.f32 %v96, %v101
  %v103 = vadd.f32 %v92, %v102
  %105 = vset.pattern.permute.xlu0 0
  %106 = vperm.xlu0 %105, %v37
  %v107 = vpop.permute.xlu0 %106
  %v109 = vlaneseq
  %v110 = vshrl.u32 %v109, 7
  %v111 = vsub.s32 2, %v110
  %v112 = vrot.slane %v81, %v111
  %v113 = vmul.f32 %v107, %v112
  %v114 = vadd.f32 %v103, %v113
  %116 = vset.pattern.permute.xlu0 0
  %117 = vperm.xlu0 %116, %v39
  %v118 = vpop.permute.xlu0 %117
  %v120 = vlaneseq
  %v121 = vshrl.u32 %v120, 7
  %v122 = vsub.s32 3, %v121
  %v123 = vrot.slane %v81, %v122
  %v124 = vmul.f32 %v118, %v123
  %v125 = vadd.f32 %v114, %v124
  %127 = vset.pattern.permute.xlu0 0
  %128 = vperm.xlu0 %127, %v41
  %v129 = vpop.permute.xlu0 %128
  %v131 = vmul.f32 %v129, %v90
  %133 = vrot.lane.b32.xlu0 %v131, 127
  %v134 = vpop.permute.xlu0 %133
  %v136 = vadd.f32 %v125, %v134
  %138 = vset.pattern.permute.xlu0 0
  %139 = vperm.xlu0 %138, %v43
  %v140 = vpop.permute.xlu0 %139
  %v142 = vmul.f32 %v140, %v101
  %144 = vrot.lane.b32.xlu0 %v142, 127
  %v145 = vpop.permute.xlu0 %144
  %v147 = vadd.f32 %v136, %v145
  %149 = vset.pattern.permute.xlu0 0
  %150 = vperm.xlu0 %149, %v45
  %v151 = vpop.permute.xlu0 %150
  %v153 = vmul.f32 %v151, %v112
  %155 = vrot.lane.b32.xlu0 %v153, 127
  %v156 = vpop.permute.xlu0 %155
  %v158 = vadd.f32 %v147, %v156
  %160 = vset.pattern.permute.xlu0 0
  %161 = vperm.xlu0 %160, %v47
  %v162 = vpop.permute.xlu0 %161
  %v164 = vmul.f32 %v162, %v123
  %166 = vrot.lane.b32.xlu0 %v164, 127
  %v167 = vpop.permute.xlu0 %166
  %v169 = vadd.f32 %v158, %v167
  %171 = vset.pattern.permute.xlu0 0
  %172 = vperm.xlu0 %171, %v49
  %v173 = vpop.permute.xlu0 %172
  %v175 = vmul.f32 %v173, %v90
  %177 = vrot.lane.b32.xlu0 %v175, 126
  %v178 = vpop.permute.xlu0 %177
  %v180 = vadd.f32 %v169, %v178
  %182 = vset.pattern.permute.xlu0 0
  %183 = vperm.xlu0 %182, %v51
  %v184 = vpop.permute.xlu0 %183
  %v186 = vmul.f32 %v184, %v101
  %188 = vrot.lane.b32.xlu0 %v186, 126
  %v189 = vpop.permute.xlu0 %188
  %v191 = vadd.f32 %v180, %v189
  %193 = vset.pattern.permute.xlu0 0
  %194 = vperm.xlu0 %193, %v53
  %v195 = vpop.permute.xlu0 %194
  %v197 = vmul.f32 %v195, %v112
  %199 = vrot.lane.b32.xlu0 %v197, 126
  %v200 = vpop.permute.xlu0 %199
  %v202 = vadd.f32 %v191, %v200
  %204 = vset.pattern.permute.xlu0 0
  %205 = vperm.xlu0 %204, %v55
  %v206 = vpop.permute.xlu0 %205
  %v208 = vmul.f32 %v206, %v123
  %210 = vrot.lane.b32.xlu0 %v208, 126
  %v211 = vpop.permute.xlu0 %210
  %v213 = vadd.f32 %v202, %v211
  %vm214 = vcmask 125952
  %215 = vst.msk [vmem:[%s6] sm:$0xf] %vm214, %v58
  %vm216 = vcmask 130048
  %217 = vst.msk [vmem:[%s6 + $0x4] sm:$0xff] %vm216, %v213
  %s218 = scalar_lea.vmem %s1, 4
  %v219 = vld [vmem:[%s218] sm:$0xf]
  %v220 = vmul.f32 %v219, %v62
  %v221 = vadd.f32 %v220, %v68
  %vm222 = vcmp.ge.f32.partialorder %v221, 0.0
  %v223 = vmul.f32 %v72, %v221
  %v224 = vsel %vm222, %v221, %v223
  %226 = vrot.lane.b32.xlu0 %v224, 1
  %v227 = vpop.permute.xlu0 %226
  %229 = vst.msk [vmem:[#allocation2] sm:$0xf] %vm79, %v227
  %v230 = vld [vmem:[#allocation2] sm:$0xf]
  %v231 = vlaneseq
  %v232 = vshrl.u32 %v231, 7
  %v233 = vsub.s32 0, %v232
  %v234 = vrot.slane %v230, %v233
  %v235 = vmul.f32 %v85, %v234
  %v236 = vadd.f32 %v31, %v235
  %v237 = vlaneseq
  %v238 = vshrl.u32 %v237, 7
  %v239 = vsub.s32 1, %v238
  %v240 = vrot.slane %v230, %v239
  %v241 = vmul.f32 %v96, %v240
  %v242 = vadd.f32 %v236, %v241
  %v243 = vlaneseq
  %v244 = vshrl.u32 %v243, 7
  %v245 = vsub.s32 2, %v244
  %v246 = vrot.slane %v230, %v245
  %v247 = vmul.f32 %v107, %v246
  %v248 = vadd.f32 %v242, %v247
  %v249 = vlaneseq
  %v250 = vshrl.u32 %v249, 7
  %v251 = vsub.s32 3, %v250
  %v252 = vrot.slane %v230, %v251
  %v253 = vmul.f32 %v118, %v252
  %v254 = vadd.f32 %v248, %v253
  %v255 = vmul.f32 %v129, %v234
  %257 = vrot.lane.b32.xlu0 %v255, 127
  %v258 = vpop.permute.xlu0 %257
  %v260 = vadd.f32 %v254, %v258
  %v261 = vmul.f32 %v140, %v240
  %263 = vrot.lane.b32.xlu0 %v261, 127
  %v264 = vpop.permute.xlu0 %263
  %v266 = vadd.f32 %v260, %v264
  %v267 = vmul.f32 %v151, %v246
  %269 = vrot.lane.b32.xlu0 %v267, 127
  %v270 = vpop.permute.xlu0 %269
  %v272 = vadd.f32 %v266, %v270
  %v273 = vmul.f32 %v162, %v252
  %275 = vrot.lane.b32.xlu0 %v273, 127
  %v276 = vpop.permute.xlu0 %275
  %v278 = vadd.f32 %v272, %v276
  %v279 = vmul.f32 %v173, %v234
  %281 = vrot.lane.b32.xlu0 %v279, 126
  %v282 = vpop.permute.xlu0 %281
  %v284 = vadd.f32 %v278, %v282
  %v285 = vmul.f32 %v184, %v240
  %287 = vrot.lane.b32.xlu0 %v285, 126
  %v288 = vpop.permute.xlu0 %287
  %v290 = vadd.f32 %v284, %v288
  %v291 = vmul.f32 %v195, %v246
  %293 = vrot.lane.b32.xlu0 %v291, 126
  %v294 = vpop.permute.xlu0 %293
  %v296 = vadd.f32 %v290, %v294
  %v297 = vmul.f32 %v206, %v252
  %299 = vrot.lane.b32.xlu0 %v297, 126
  %v300 = vpop.permute.xlu0 %299
  %v302 = vadd.f32 %v296, %v300
  %s303 = scalar_lea.vmem %s6, 16
  %304 = vst.msk [vmem:[%s303] sm:$0xf] %vm214, %v219
  %305 = vst.msk [vmem:[%s303 + $0x4] sm:$0xff] %vm216, %v302
  // Predicated region
  $region26: #{dense_conv_layer.1} parent=0 // pred_check
    _
  $region27: #{dense_conv_layer.1} parent=0 // pred_check_branch
    %307 = sbr.rel (0) target = $region29
  $region28: #{dense_conv_layer.1} parent=0 // pred_region
    _
  $region29: #{dense_conv_layer.1} parent=0 // pred_fallthru
    _
  // Predicated region
  $region30: #{dense_conv_layer.1} parent=0 // pred_check
    _
  $region31: #{dense_conv_layer.1} parent=0 // pred_check_branch
    %309 = sbr.rel (0) target = $region33
  $region32: #{dense_conv_layer.1} parent=0 // pred_region
    _
  $region33: #{dense_conv_layer.1} parent=0 // pred_fallthru
    _

</llo_original>
